<compile_context>
chip_gen: v7x
topology: tpu7x:2x2x1
jax: 0.10.0
libtpu: 0.0.40
codegen_flags: <defaults>
</compile_context>

<pallas_src>
import jax
import jax.numpy as jnp
from jax import lax
from jax.experimental import pallas as pl
from jax.experimental.pallas import tpu as pltpu


def _round_up(x: int, m: int) -> int:
    return ((x + m - 1) // m) * m


def _make_actor_kernel(sub: int, n_sub: int):
    """Builds the fused feature-major MLP kernel for one batch tile.

    Refs seen by the kernel:
      s_ref : (tb, s_dim)      streamed batch tile (HBM layout, batch-major)
      wK_ref: (out, in)        PyTorch-native weights, VMEM-resident
      o_ref : (a_dim, tb)      batch on the lane axis -> lane-dense stores
    """

    def kernel(s_ref, w1_ref, w2_ref, w3_ref, o_ref):
        # Tiny weights (~9 vregs total): load once per grid step, reuse in loop.
        w1 = w1_ref[...]
        w2 = w2_ref[...]
        w3 = w3_ref[...]

        def mlp(s_t):
            # s_t: (s_dim, chunk); all matmuls are W @ x, f32 accumulation.
            h1 = jnp.tanh(jnp.dot(w1, s_t, preferred_element_type=jnp.float32))
            h2 = jnp.tanh(jnp.dot(w2, h1, preferred_element_type=jnp.float32))
            return jnp.tanh(jnp.dot(w3, h2, preferred_element_type=jnp.float32))

        if n_sub == 1:
            # Single chunk covers the whole tile.
            o_ref[...] = mlp(jnp.transpose(s_ref[...])).astype(o_ref.dtype)
        else:
            # Short unrolled loop over lane-aligned sub-chunks: bounds h1/h2
            # live ranges (no vreg spills) while keeping big DMA tiles.
            def body(j, carry):
                start = pl.multiple_of(j * sub, sub)
                s_t = jnp.transpose(s_ref[pl.ds(start, sub), :])  # XLU transpose
                y = mlp(s_t)
                o_ref[:, pl.ds(start, sub)] = y.astype(o_ref.dtype)
                return carry

            lax.fori_loop(0, n_sub, body, 0, unroll=True)

    return kernel


def deterministic_actor_forward(s, w1, w2, w3, *, block_b: int = 4096, sub_b: int = 512):
    """Fused forward pass: tanh(tanh(tanh(s @ W1.T) @ W2.T) @ W3.T).

    s : [B, s_dim] states.
    wK: PyTorch-native [out, in] weights (no transposed copies needed).
    """
    B, s_dim = s.shape
    hidden = w1.shape[0]
    a_dim = w3.shape[0]
    assert w1.shape == (hidden, s_dim)
    assert w2.shape == (hidden, hidden)
    assert w3.shape == (a_dim, hidden)

    # ---- tile selection ----------------------------------------------------
    # sub_b: in-kernel sub-chunk width (lane extent of each matmul/tanh/store),
    # forced to a multiple of 128 so stores are unmasked and aligned.
    sub_b = max(128, (sub_b // 128) * 128)
    if B <= sub_b:
        tb, sub, n_sub = B, B, 1                      # single full-extent tile
    else:
        blk = max(sub_b, (block_b // sub_b) * sub_b)  # tile = multiple of sub_b
        # Prefer >= 2 grid steps so v7x megacore can split the batch across
        # its two TensorCores (harmless on single-TC v5e/v6e).
        half = _round_up(pl.cdiv(B, 2), sub_b)
        tb = min(blk, half)
        sub, n_sub = sub_b, tb // sub_b
    grid = (pl.cdiv(B, tb),)  # ragged last block: no jnp.pad, no output slice

    itemsize = jnp.dtype(s.dtype).itemsize
    flops = 2 * B * (s_dim * hidden + hidden * hidden + hidden * a_dim)
    transcendentals = B * (2 * hidden + a_dim)
    bytes_accessed = (B * s_dim + B * a_dim
                      + hidden * s_dim + hidden * hidden + a_dim * hidden) * itemsize

    out_t = pl.pallas_call(
        _make_actor_kernel(sub, n_sub),
        out_shape=jax.ShapeDtypeStruct((a_dim, B), s.dtype),   # batch on lanes
        grid=grid,
        in_specs=[
            pl.BlockSpec((tb, s_dim), lambda i: (i, 0)),        # streamed state tile
            pl.BlockSpec((hidden, s_dim), lambda i: (0, 0)),    # weights: VMEM-resident
            pl.BlockSpec((hidden, hidden), lambda i: (0, 0)),
            pl.BlockSpec((a_dim, hidden), lambda i: (0, 0)),
        ],
        out_specs=pl.BlockSpec((a_dim, tb), lambda i: (0, i)),
        compiler_params=pltpu.CompilerParams(
            dimension_semantics=("parallel",),
        ),
        cost_estimate=pl.CostEstimate(
            flops=flops,
            transcendentals=transcendentals,
            bytes_accessed=bytes_accessed,
        ),
    )(s, w1, w2, w3)

    # Tiny (a_dim, B) -> (B, a_dim) relayout in the wrapper (touches B*a_dim*4 B).
    return out_t.T


def init_actor_params(key, s_dim, a_dim, hidden, dtype=jnp.float32):
    """nn.Linear default init U(-1/sqrt(fan_in), 1/sqrt(fan_in)), [out, in] layout."""
    k1, k2, k3 = jax.random.split(key, 3)

    def lin(k, in_d, out_d):
        bound = 1.0 / (in_d ** 0.5)
        return jax.random.uniform(k, (out_d, in_d), dtype=dtype,
                                  minval=-bound, maxval=bound)

    w1 = lin(k1, s_dim, hidden)   # Linear(s_dim, hidden, bias=False)
    w2 = lin(k2, hidden, hidden)  # Linear(hidden, hidden, bias=False)
    w3 = lin(k3, hidden, a_dim)   # Linear(hidden, a_dim, bias=False)
    return w1, w2, w3


def reference_forward(s, w1, w2, w3):
    # Pure-JAX reference with the exact PyTorch semantics (y = x @ W.T per layer).
    h1 = jnp.tanh(s @ w1.T)
    h2 = jnp.tanh(h1 @ w2.T)
    return jnp.tanh(h2 @ w3.T)


if __name__ == "__main__":
    key = jax.random.PRNGKey(0)
    k_s1, k_s2, k_p = jax.random.split(key, 3)

    # Shapes consistent with the UAV controller (state / action dims).
    s_dim, a_dim, hidden = 12, 4, 32
    w1, w2, w3 = init_actor_params(k_p, s_dim, a_dim, hidden)

    fwd = jax.jit(deterministic_actor_forward, static_argnames=("block_b", "sub_b"))

    # Case 1: tiny batch (single-env inference path) -> single full-extent tile.
    s_small = jax.random.normal(k_s1, (8, s_dim), dtype=jnp.float32)
    out_small = jax.block_until_ready(fwd(s_small, w1, w2, w3))
    ref_small = reference_forward(s_small, w1, w2, w3)
    assert out_small.shape == (8, a_dim)
    assert jnp.allclose(out_small, ref_small, atol=2e-5, rtol=2e-5), "mismatch (small batch)"

    # Case 2: ragged multi-tile batch with small tiles so the multi-step grid,
    # resident weights, in-kernel sub-chunk loop and masked tail writeback are
    # all exercised (B=600, tb=384, sub=128 -> grid=2, n_sub=3).
    s_big = jax.random.normal(k_s2, (600, s_dim), dtype=jnp.float32)
    out_big = jax.block_until_ready(fwd(s_big, w1, w2, w3, block_b=512, sub_b=128))
    ref_big = reference_forward(s_big, w1, w2, w3)
    assert out_big.shape == (600, a_dim)
    assert jnp.allclose(out_big, ref_big, atol=2e-5, rtol=2e-5), "mismatch (tiled batch)"

    print("KERNEL_OK")
</pallas_src>

<mosaic_0001>
module attributes {stable_mosaic.version = 11 : i64} {
  func.func @kernel(%arg0: i32, %arg1: memref<8x12xf32, #tpu.memory_space<vmem>>, %arg2: memref<32x12xf32, #tpu.memory_space<vmem>>, %arg3: memref<32x32xf32, #tpu.memory_space<vmem>>, %arg4: memref<4x32xf32, #tpu.memory_space<vmem>>, %arg5: memref<4x8xf32, #tpu.memory_space<vmem>>) attributes {dimension_semantics = [#tpu.dimension_semantics<parallel>], iteration_bounds = array<i64: 1>, scalar_prefetch = 0 : i64, scratch_operands = 0 : i64, tpu.core_type = #tpu.core_type<tc>, window_params = [{transform_indices = @transform_0, window_bounds = array<i64: 8, 12>}, {pipeline_mode = #tpu.pipeline_mode<synchronous>, transform_indices = @transform_1, window_bounds = array<i64: 32, 12>}, {pipeline_mode = #tpu.pipeline_mode<synchronous>, transform_indices = @transform_2, window_bounds = array<i64: 32, 32>}, {pipeline_mode = #tpu.pipeline_mode<synchronous>, transform_indices = @transform_3, window_bounds = array<i64: 4, 32>}, {transform_indices = @transform_4, window_bounds = array<i64: 4, 8>}]} {
    %c0 = arith.constant 0 : index
    %c0_0 = arith.constant 0 : index
    %0 = vector.load %arg2[%c0, %c0_0] : memref<32x12xf32, #tpu.memory_space<vmem>>, vector<32x12xf32>
    %c0_1 = arith.constant 0 : index
    %c0_2 = arith.constant 0 : index
    %1 = vector.load %arg3[%c0_1, %c0_2] : memref<32x32xf32, #tpu.memory_space<vmem>>, vector<32x32xf32>
    %c0_3 = arith.constant 0 : index
    %c0_4 = arith.constant 0 : index
    %2 = vector.load %arg4[%c0_3, %c0_4] : memref<4x32xf32, #tpu.memory_space<vmem>>, vector<4x32xf32>
    %c0_5 = arith.constant 0 : index
    %c0_6 = arith.constant 0 : index
    %3 = vector.load %arg1[%c0_5, %c0_6] : memref<8x12xf32, #tpu.memory_space<vmem>>, vector<8x12xf32>
    %4 = tpu.transpose %3, [1, 0] : vector<8x12xf32> -> vector<12x8xf32>
    %cst = arith.constant dense<0.000000e+00> : vector<32x8xf32>
    %5 = tpu.matmul %0, %4, %cst {dimension_numbers = #tpu.dot_dimension_numbers<[1], [0], [0], [1], [0, 0, 1, 1], [], []>} : vector<32x12xf32>, vector<12x8xf32>, vector<32x8xf32> -> vector<32x8xf32>
    %6 = math.tanh %5 : vector<32x8xf32>
    %cst_7 = arith.constant dense<0.000000e+00> : vector<32x8xf32>
    %7 = tpu.matmul %1, %6, %cst_7 {dimension_numbers = #tpu.dot_dimension_numbers<[1], [0], [0], [1], [0, 0, 1, 1], [], []>} : vector<32x32xf32>, vector<32x8xf32>, vector<32x8xf32> -> vector<32x8xf32>
    %8 = math.tanh %7 : vector<32x8xf32>
    %cst_8 = arith.constant dense<0.000000e+00> : vector<4x8xf32>
    %9 = tpu.matmul %2, %8, %cst_8 {dimension_numbers = #tpu.dot_dimension_numbers<[1], [0], [0], [1], [0, 0, 1, 1], [], []>} : vector<4x32xf32>, vector<32x8xf32>, vector<4x8xf32> -> vector<4x8xf32>
    %10 = math.tanh %9 : vector<4x8xf32>
    %c0_9 = arith.constant 0 : index
    %c0_10 = arith.constant 0 : index
    %11 = vector.load %arg5[%c0_9, %c0_10] : memref<4x8xf32, #tpu.memory_space<vmem>>, vector<4x8xf32>
    tpu.vector_store %arg5[%c0_9, %c0_10], %10 {strides = array<i32>} : memref<4x8xf32, #tpu.memory_space<vmem>>, vector<4x8xf32>,
    return
  }
  func.func @transform_0(%arg0: i32) -> (i32, i32) {
    %c0_i32 = arith.constant 0 : i32
    %c0_i32_0 = arith.constant 0 : i32
    return %arg0, %c0_i32 : i32, i32
  }
  func.func @transform_1(%arg0: i32) -> (i32, i32) {
    %c0_i32 = arith.constant 0 : i32
    %c0_i32_0 = arith.constant 0 : i32
    %c0_i32_1 = arith.constant 0 : i32
    return %c0_i32, %c0_i32_0 : i32, i32
  }
  func.func @transform_2(%arg0: i32) -> (i32, i32) {
    %c0_i32 = arith.constant 0 : i32
    %c0_i32_0 = arith.constant 0 : i32
    %c0_i32_1 = arith.constant 0 : i32
    return %c0_i32, %c0_i32_0 : i32, i32
  }
  func.func @transform_3(%arg0: i32) -> (i32, i32) {
    %c0_i32 = arith.constant 0 : i32
    %c0_i32_0 = arith.constant 0 : i32
    %c0_i32_1 = arith.constant 0 : i32
    return %c0_i32, %c0_i32_0 : i32, i32
  }
  func.func @transform_4(%arg0: i32) -> (i32, i32) {
    %c0_i32 = arith.constant 0 : i32
    %c0_i32_0 = arith.constant 0 : i32
    return %c0_i32, %arg0 : i32, i32
  }
}

</mosaic_0001>

<llo_original>
// kernel: deterministic_actor_forward.1
$region0: #{deterministic_actor_forward.1}
  #allocation0 [shape = 'u32[]', space=smem, size = 0x4, offset = 0x4, fixed_abs, tag = 'smem constant byte address 0x4 - core index']
  #allocation1 [shape = 'u32[144,128]{1,0:T(1,128)}', space=vmem, size = 0x12000, scoped, tag = 'internal scratch']
  %s0 = inlined_call_operand.vmem [shape: f32[8,12], index: 0, kind: input, shape index: {}]
  %s1 = inlined_call_operand.vmem [shape: f32[32,12], index: 1, kind: input, shape index: {}]
  %s2 = inlined_call_operand.vmem [shape: f32[32,32], index: 2, kind: input, shape index: {}]
  %s3 = inlined_call_operand.vmem [shape: f32[4,32], index: 3, kind: input, shape index: {}]
  %s4 = inlined_call_operand.hbm [shape: f32[4,8], index: 4, kind: output, shape index: {}]
  %s5 = sld [smem:[#allocation0]]
  $region26: #{deterministic_actor_forward.1} parent=0
    _
  %s7 = ssub.s32 1, %s5
  %s8 = scalar_select 0, %s7, %s5
  $region1: #{deterministic_actor_forward.1} parent=0
    #allocation2 [shape = 'u8[2048]{0}', space=vmem, size = 0x800, scoped, tag = 'output window, operand 0, single buffered']
    #allocation3 [shape = 's32[1]{0}', space=sflag, size = 0x4, scoped, tag = 'scoped memory for deterministic_actor_forward.1']
    %9 = vsyncpa [#allocation3], 0
    // Predicated region
    $region2: #{deterministic_actor_forward.1} parent=1 // pred_check
      _
    $region3: #{deterministic_actor_forward.1} parent=1 // pred_check_branch
      %11 = sbr.rel (0) target = $region5
    $region4: #{deterministic_actor_forward.1} parent=1 // pred_region
      _
    $region5: #{deterministic_actor_forward.1} parent=1 // pred_fallthru
      _
    // Predicated region
    $region6: #{deterministic_actor_forward.1} parent=1 // pred_check
      _
    $region7: #{deterministic_actor_forward.1} parent=1 // pred_check_branch
      %13 = sbr.rel (0) target = $region9
    $region8: #{deterministic_actor_forward.1} parent=1 // pred_region
      _
    $region9: #{deterministic_actor_forward.1} parent=1 // pred_fallthru
      _
    // Predicated region
    $region10: #{deterministic_actor_forward.1} parent=1 // pred_check
      _
    $region11: #{deterministic_actor_forward.1} parent=1 // pred_check_branch
      %15 = sbr.rel (0) target = $region13
    $region12: #{deterministic_actor_forward.1} parent=1 // pred_region
      _
    $region13: #{deterministic_actor_forward.1} parent=1 // pred_fallthru
      _
    // Predicated region
    $region14: #{deterministic_actor_forward.1} parent=1 // pred_check
      _
    $region15: #{deterministic_actor_forward.1} parent=1 // pred_check_branch
      %17 = sbr.rel (0) target = $region17
    $region16: #{deterministic_actor_forward.1} parent=1 // pred_region
      _
    $region17: #{deterministic_actor_forward.1} parent=1 // pred_fallthru
      _
    %v18 = vld [vmem:[%s1] sm:$0xff]
    %v19 = vld [vmem:[%s1 + $0x8] sm:$0xff]
    %v20 = vld [vmem:[%s1 + $0x10] sm:$0xff]
    %v21 = vld [vmem:[%s1 + $0x18] sm:$0xff]
    %v22 = vld [vmem:[%s2] sm:$0xff]
    %v23 = vld [vmem:[%s2 + $0x8] sm:$0xff]
    %v24 = vld [vmem:[%s2 + $0x10] sm:$0xff]
    %v25 = vld [vmem:[%s2 + $0x18] sm:$0xff]
    %v26 = vld [vmem:[%s3] sm:$0xf]
    %v27 = vld [vmem:[%s0] sm:$0xff]
    %vm28 = vcmask 97280
    %v30 = vsel %vm28, %v18, 0
    %v33 = vsel %vm28, %v19, 0
    %v36 = vsel %vm28, %v20, 0
    %v39 = vsel %vm28, %v21, 0
    %v42 = vsel %vm28, %v27, 0
    %44 = vmatprep.subr.mxu0 0.0
    %45 = vmatpush1.xpose.msra.mxu0 %v42
    %46 = vmatprep.subr.mxu0 0.0
    %47 = vmatpush1.xpose.msra.mxu0 0.0
    %48 = vmatprep.subr.mxu0 0.0
    %49 = vmatpush1.xpose.msra.mxu0 0.0
    %50 = vmatprep.subr.mxu0 0.0
    %51 = vmatpush1.xpose.msra.mxu0 0.0
    %52 = vmatprep.subr.mxu0 0.0
    %53 = vmatpush1.xpose.msra.mxu0 0.0
    %54 = vmatprep.subr.mxu0 0.0
    %55 = vmatpush1.xpose.msra.mxu0 0.0
    %56 = vmatprep.subr.mxu0 0.0
    %57 = vmatpush1.xpose.msra.mxu0 0.0
    %58 = vmatprep.subr.mxu0 0.0
    %59 = vmatpush1.xpose.msra.mxu0 0.0
    %60 = vmatprep.subr.mxu0 0.0
    %61 = vmatpush1.xpose.msra.mxu0 0.0
    %62 = vmatprep.subr.mxu0 0.0
    %63 = vmatpush1.xpose.msra.mxu0 0.0
    %64 = vmatprep.subr.mxu0 0.0
    %65 = vmatpush1.xpose.msra.mxu0 0.0
    %66 = vmatprep.subr.mxu0 0.0
    %67 = vmatpush1.xpose.msra.mxu0 0.0
    %68 = vmatprep.subr.mxu0 0.0
    %69 = vmatpush1.xpose.msra.mxu0 0.0
    %70 = vmatprep.subr.mxu0 0.0
    %71 = vmatpush1.xpose.msra.mxu0 0.0
    %72 = vmatprep.subr.mxu0 0.0
    %73 = vmatpush1.xpose.msra.mxu0 0.0
    %74 = vmatprep.subr.mxu0 0.0
    %75 = vmatpush1.xpose.msra.mxu0 0.0
    %76 = vmatprep.subr.mxu0 0.0
    %77 = vmatpush1.xpose.msra.mxu0 0.0
    %78 = vmatprep.subr.mxu0 0.0
    %79 = vmatpush1.xpose.msra.mxu0 0.0
    %80 = vmatprep.subr.mxu0 0.0
    %81 = vmatpush1.xpose.msra.mxu0 0.0
    %82 = vmatprep.subr.mxu0 0.0
    %83 = vmatpush1.xpose.msra.mxu0 0.0
    %84 = vmatprep.subr.mxu0 0.0
    %85 = vmatpush1.xpose.msra.mxu0 0.0
    %86 = vmatprep.subr.mxu0 0.0
    %87 = vmatpush1.xpose.msra.mxu0 0.0
    %88 = vmatprep.subr.mxu0 0.0
    %89 = vmatpush1.xpose.msra.mxu0 0.0
    %90 = vmatprep.subr.mxu0 0.0
    %91 = vmatpush1.xpose.msra.mxu0 0.0
    %92 = vmatprep.subr.mxu0 0.0
    %93 = vmatpush1.xpose.msra.mxu0 0.0
    %94 = vmatprep.subr.mxu0 0.0
    %95 = vmatpush1.xpose.msra.mxu0 0.0
    %96 = vmatprep.subr.mxu0 0.0
    %97 = vmatpush1.xpose.msra.mxu0 0.0
    %98 = vmatprep.subr.mxu0 0.0
    %99 = vmatpush1.xpose.msra.mxu0 0.0
    %100 = vmatprep.subr.mxu0 0.0
    %101 = vmatpush1.xpose.msra.mxu0 0.0
    %102 = vmatprep.subr.mxu0 0.0
    %103 = vmatpush1.xpose.msra.mxu0 0.0
    %104 = vmatprep.subr.mxu0 0.0
    %105 = vmatpush1.xpose.msra.mxu0 0.0
    %106 = vmatprep.subr.mxu0 0.0
    %107 = vmatpush1.xpose.msra.mxu0 0.0
    %108 = vmatprep.mubr.f32.mxu0 0.0
    %109 = vmatmul.mubr.f32.gmra.mrb[0].mxu0 %v30
    %v110 = vpop.f32.mrb[0].mxu0
    %v111 = vadd.f32 0.0, %v110
    %v112 = vpop.f32.mrb[0].mxu0
    %113 = vmatprep.mubr.f32.mxu0 0.0
    %114 = vmatmul.mubr.f32.gmra.mrb[0].mxu0 %v33
    %v115 = vpop.f32.mrb[0].mxu0
    %v116 = vadd.f32 0.0, %v115
    %v117 = vpop.f32.mrb[0].mxu0
    %118 = vmatprep.mubr.f32.mxu0 0.0
    %119 = vmatmul.mubr.f32.gmra.mrb[0].mxu0 %v36
    %v120 = vpop.f32.mrb[0].mxu0
    %v121 = vadd.f32 0.0, %v120
    %v122 = vpop.f32.mrb[0].mxu0
    %123 = vmatprep.mubr.f32.mxu0 0.0
    %124 = vmatmul.mubr.f32.gmra.mrb[0].mxu0 %v39
    %v125 = vpop.f32.mrb[0].mxu0
    %v126 = vadd.f32 0.0, %v125
    %v127 = vpop.f32.mrb[0].mxu0
    %128 = vdwg.mxu0
    %v129 = vtanh.pop %v111
    %v130 = vtanh.pop %v116
    %v131 = vtanh.pop %v121
    %v132 = vtanh.pop %v126
    %vm133 = vcmask 261120
    %v135 = vsel %vm133, %v22, 0
    %v138 = vsel %vm133, %v23, 0
    %v141 = vsel %vm133, %v24, 0
    %v144 = vsel %vm133, %v25, 0
    %146 = vmatprep.subr.mxu0 0.0
    %147 = vmatpush1.msra.mxu0 %v129
    %148 = vmatprep.subr.mxu0 0.0
    %149 = vmatpush1.msra.mxu0 %v130
    %150 = vmatprep.subr.mxu0 0.0
    %151 = vmatpush1.msra.mxu0 %v131
    %152 = vmatprep.subr.mxu0 0.0
    %153 = vmatpush1.msra.mxu0 %v132
    %154 = vmatprep.subr.mxu0 0.0
    %155 = vmatpush1.msra.mxu0 0.0
    %156 = vmatprep.subr.mxu0 0.0
    %157 = vmatpush1.msra.mxu0 0.0
    %158 = vmatprep.subr.mxu0 0.0
    %159 = vmatpush1.msra.mxu0 0.0
    %160 = vmatprep.subr.mxu0 0.0
    %161 = vmatpush1.msra.mxu0 0.0
    %162 = vmatprep.subr.mxu0 0.0
    %163 = vmatpush1.msra.mxu0 0.0
    %164 = vmatprep.subr.mxu0 0.0
    %165 = vmatpush1.msra.mxu0 0.0
    %166 = vmatprep.subr.mxu0 0.0
    %167 = vmatpush1.msra.mxu0 0.0
    %168 = vmatprep.subr.mxu0 0.0
    %169 = vmatpush1.msra.mxu0 0.0
    %170 = vmatprep.subr.mxu0 0.0
    %171 = vmatpush1.msra.mxu0 0.0
    %172 = vmatprep.subr.mxu0 0.0
    %173 = vmatpush1.msra.mxu0 0.0
    %174 = vmatprep.subr.mxu0 0.0
    %175 = vmatpush1.msra.mxu0 0.0
    %176 = vmatprep.subr.mxu0 0.0
    %177 = vmatpush1.msra.mxu0 0.0
    %178 = vmatprep.subr.mxu0 0.0
    %179 = vmatpush1.msra.mxu0 0.0
    %180 = vmatprep.subr.mxu0 0.0
    %181 = vmatpush1.msra.mxu0 0.0
    %182 = vmatprep.subr.mxu0 0.0
    %183 = vmatpush1.msra.mxu0 0.0
    %184 = vmatprep.subr.mxu0 0.0
    %185 = vmatpush1.msra.mxu0 0.0
    %186 = vmatprep.subr.mxu0 0.0
    %187 = vmatpush1.msra.mxu0 0.0
    %188 = vmatprep.subr.mxu0 0.0
    %189 = vmatpush1.msra.mxu0 0.0
    %190 = vmatprep.subr.mxu0 0.0
    %191 = vmatpush1.msra.mxu0 0.0
    %192 = vmatprep.subr.mxu0 0.0
    %193 = vmatpush1.msra.mxu0 0.0
    %194 = vmatprep.subr.mxu0 0.0
    %195 = vmatpush1.msra.mxu0 0.0
    %196 = vmatprep.subr.mxu0 0.0
    %197 = vmatpush1.msra.mxu0 0.0
    %198 = vmatprep.subr.mxu0 0.0
    %199 = vmatpush1.msra.mxu0 0.0
    %200 = vmatprep.subr.mxu0 0.0
    %201 = vmatpush1.msra.mxu0 0.0
    %202 = vmatprep.subr.mxu0 0.0
    %203 = vmatpush1.msra.mxu0 0.0
    %204 = vmatprep.subr.mxu0 0.0
    %205 = vmatpush1.msra.mxu0 0.0
    %206 = vmatprep.subr.mxu0 0.0
    %207 = vmatpush1.msra.mxu0 0.0
    %208 = vmatprep.subr.mxu0 0.0
    %209 = vmatpush1.msra.mxu0 0.0
    %210 = vmatprep.mubr.f32.mxu0 0.0
    %211 = vmatmul.mubr.f32.gmra.mrb[0].mxu0 %v135
    %v212 = vpop.f32.mrb[0].mxu0
    %v213 = vadd.f32 0.0, %v212
    %v214 = vpop.f32.mrb[0].mxu0
    %215 = vmatprep.mubr.f32.mxu0 0.0
    %216 = vmatmul.mubr.f32.gmra.mrb[0].mxu0 %v138
    %v217 = vpop.f32.mrb[0].mxu0
    %v218 = vadd.f32 0.0, %v217
    %v219 = vpop.f32.mrb[0].mxu0
    %220 = vmatprep.mubr.f32.mxu0 0.0
    %221 = vmatmul.mubr.f32.gmra.mrb[0].mxu0 %v141
    %v222 = vpop.f32.mrb[0].mxu0
    %v223 = vadd.f32 0.0, %v222
    %v224 = vpop.f32.mrb[0].mxu0
    %225 = vmatprep.mubr.f32.mxu0 0.0
    %226 = vmatmul.mubr.f32.gmra.mrb[0].mxu0 %v144
    %v227 = vpop.f32.mrb[0].mxu0
    %v228 = vadd.f32 0.0, %v227
    %v229 = vpop.f32.mrb[0].mxu0
    %230 = vdwg.mxu0
    %v231 = vtanh.pop %v213
    %v232 = vtanh.pop %v218
    %v233 = vtanh.pop %v223
    %v234 = vtanh.pop %v228
    %v236 = vsel %vm133, %v26, 0
    %238 = vmatprep.subr.mxu0 0.0
    %239 = vmatpush1.msra.mxu0 %v231
    %240 = vmatprep.subr.mxu0 0.0
    %241 = vmatpush1.msra.mxu0 %v232
    %242 = vmatprep.subr.mxu0 0.0
    %243 = vmatpush1.msra.mxu0 %v233
    %244 = vmatprep.subr.mxu0 0.0
    %245 = vmatpush1.msra.mxu0 %v234
    %246 = vmatprep.subr.mxu0 0.0
    %247 = vmatpush1.msra.mxu0 0.0
    %248 = vmatprep.subr.mxu0 0.0
    %249 = vmatpush1.msra.mxu0 0.0
    %250 = vmatprep.subr.mxu0 0.0
    %251 = vmatpush1.msra.mxu0 0.0
    %252 = vmatprep.subr.mxu0 0.0
    %253 = vmatpush1.msra.mxu0 0.0
    %254 = vmatprep.subr.mxu0 0.0
    %255 = vmatpush1.msra.mxu0 0.0
    %256 = vmatprep.subr.mxu0 0.0
    %257 = vmatpush1.msra.mxu0 0.0
    %258 = vmatprep.subr.mxu0 0.0
    %259 = vmatpush1.msra.mxu0 0.0
    %260 = vmatprep.subr.mxu0 0.0
    %261 = vmatpush1.msra.mxu0 0.0
    %262 = vmatprep.subr.mxu0 0.0
    %263 = vmatpush1.msra.mxu0 0.0
    %264 = vmatprep.subr.mxu0 0.0
    %265 = vmatpush1.msra.mxu0 0.0
    %266 = vmatprep.subr.mxu0 0.0
    %267 = vmatpush1.msra.mxu0 0.0
    %268 = vmatprep.subr.mxu0 0.0
    %269 = vmatpush1.msra.mxu0 0.0
    %270 = vmatprep.subr.mxu0 0.0
    %271 = vmatpush1.msra.mxu0 0.0
    %272 = vmatprep.subr.mxu0 0.0
    %273 = vmatpush1.msra.mxu0 0.0
    %274 = vmatprep.subr.mxu0 0.0
    %275 = vmatpush1.msra.mxu0 0.0
    %276 = vmatprep.subr.mxu0 0.0
    %277 = vmatpush1.msra.mxu0 0.0
    %278 = vmatprep.subr.mxu0 0.0
    %279 = vmatpush1.msra.mxu0 0.0
    %280 = vmatprep.subr.mxu0 0.0
    %281 = vmatpush1.msra.mxu0 0.0
    %282 = vmatprep.subr.mxu0 0.0
    %283 = vmatpush1.msra.mxu0 0.0
    %284 = vmatprep.subr.mxu0 0.0
    %285 = vmatpush1.msra.mxu0 0.0
    %286 = vmatprep.subr.mxu0 0.0
    %287 = vmatpush1.msra.mxu0 0.0
    %288 = vmatprep.subr.mxu0 0.0
    %289 = vmatpush1.msra.mxu0 0.0
    %290 = vmatprep.subr.mxu0 0.0
    %291 = vmatpush1.msra.mxu0 0.0
    %292 = vmatprep.subr.mxu0 0.0
    %293 = vmatpush1.msra.mxu0 0.0
    %294 = vmatprep.subr.mxu0 0.0
    %295 = vmatpush1.msra.mxu0 0.0
    %296 = vmatprep.subr.mxu0 0.0
    %297 = vmatpush1.msra.mxu0 0.0
    %298 = vmatprep.subr.mxu0 0.0
    %299 = vmatpush1.msra.mxu0 0.0
    %300 = vmatprep.subr.mxu0 0.0
    %301 = vmatpush1.msra.mxu0 0.0
    %302 = vmatprep.mubr.f32.mxu0 0.0
    %303 = vmatmul.mubr.f32.gmra.mrb[0].mxu0 %v236
    %v304 = vpop.f32.mrb[0].mxu0
    %v305 = vadd.f32 0.0, %v304
    %v306 = vpop.f32.mrb[0].mxu0
    %307 = vdwg.mxu0
    %v308 = vtanh.pop %v305
    %vm309 = vcmask 60416
    %310 = vst.msk [vmem:[#allocation2] sm:$0xf] %vm309, %v308
    // Predicated region
    $region18: #{deterministic_actor_forward.1} parent=1 // pred_check
      _
    $region19: #{deterministic_actor_forward.1} parent=1 // pred_check_branch
      %312 = sbr.rel (0) target = $region21
    $region20: #{deterministic_actor_forward.1} parent=1 // pred_region
      %s314 = ssub.s32 64, 64
      %315 = vsyncadd [#allocation3], %s314
      %s317 = sshll.u32 [#allocation2], 4
      %s318 = int_to_ptr.vmem [resolvable:$true] %s317
      %320 = dma.vmem_to_hbm [thread:$0]  %s318, 64, %s4, [#allocation3]
    $region21: #{deterministic_actor_forward.1} parent=1 // pred_fallthru
      _
    // Predicated region
    $region22: #{deterministic_actor_forward.1} parent=1 // pred_check
      _
    $region23: #{deterministic_actor_forward.1} parent=1 // pred_check_branch
      %322 = sbr.rel (0) target = $region25
    $region24: #{deterministic_actor_forward.1} parent=1 // pred_region
      %323 = dma.done [#allocation3], 64
    $region25: #{deterministic_actor_forward.1} parent=1 // pred_fallthru
      _
    %324 = vsyncpa [#allocation3], 1

</llo_original>
